<compile_context>
chip_gen: v5e
topology: v5e:2x2
jax: 0.10.0
libtpu: 0.0.40
codegen_flags: <defaults>
</compile_context>

<pallas_src>
import functools

import jax
import jax.numpy as jnp
from jax.experimental import pallas as pl
from jax.experimental.pallas import tpu as pltpu

_LANE = 128
_SUBLANE = 8
_MAX_TILE_B = 512  # sized against v7x's 64 MiB VMEM (double-buffered x/out tiles)


def _round_up(v: int, m: int) -> int:
    return ((v + m - 1) // m) * m


def _mlp_kernel(x_ref, w1_ref, b1_ref, w2_ref, b2_ref, o_ref):
    # ff1: x @ W1 (bf16 operands, f32 accumulate on the MXU) + b1 (f32)
    h = jnp.dot(x_ref[...], w1_ref[...], preferred_element_type=jnp.float32)
    h = h + b1_ref[...]
    # sigmoid: exp + approx reciprocal -> both on the EUP slot, f32 math.
    h = pl.reciprocal(1.0 + jnp.exp(-h), approx=True)
    # ff2: h @ W2 (cast activations back to bf16 for the MXU) + b2 (f32)
    out = jnp.dot(h.astype(w2_ref.dtype), w2_ref[...],
                  preferred_element_type=jnp.float32)
    o_ref[...] = (out + b2_ref[...]).astype(o_ref.dtype)


def biased_model_forward(x, w1, b1, w2, b2):
    """Fused 2-layer MLP forward.

    x : (B, in)        float32
    w1: (in, hidden)   float32   (transpose of PyTorch's (out, in) layout)
    b1: (1, hidden)    float32
    w2: (hidden, out)  float32
    b2: (1, out)       float32
    returns (B, out)   float32
    """
    B, in_size = x.shape
    hidden = w1.shape[1]
    out_size = w2.shape[1]

    # Lane-dense padding of every feature dim, sublane-aligned batch tiling.
    in_p = _round_up(in_size, _LANE)
    hid_p = _round_up(hidden, _LANE)
    out_p = _round_up(out_size, _LANE)
    tile_b = min(_MAX_TILE_B, _round_up(B, _SUBLANE))
    B_p = _round_up(B, tile_b)

    # Zero padding is semantics-preserving: padded hidden units see zero
    # weights/bias -> sigmoid(0)=0.5, but their w2 rows are zero -> contribute 0.
    x_p = jnp.pad(x, ((0, B_p - B), (0, in_p - in_size))).astype(jnp.bfloat16)
    w1_p = jnp.pad(w1, ((0, in_p - in_size), (0, hid_p - hidden))).astype(jnp.bfloat16)
    b1_p = jnp.pad(b1, ((0, 0), (0, hid_p - hidden))).astype(jnp.float32)
    w2_p = jnp.pad(w2, ((0, hid_p - hidden), (0, out_p - out_size))).astype(jnp.bfloat16)
    b2_p = jnp.pad(b2, ((0, 0), (0, out_p - out_size))).astype(jnp.float32)

    grid = (B_p // tile_b,)

    stream = lambda shape: pl.BlockSpec(shape, lambda i: (0, 0) if shape[0] != tile_b else (i, 0))
    resident = lambda shape: pl.BlockSpec(shape, lambda i: (0, 0))

    cost = pl.CostEstimate(
        flops=2 * B_p * (in_p * hid_p + hid_p * out_p),
        transcendentals=B_p * hid_p,
        bytes_accessed=(x_p.size * 2 + w1_p.size * 2 + w2_p.size * 2
                        + b1_p.size * 4 + b2_p.size * 4 + B_p * out_p * 4),
    )

    out_padded = pl.pallas_call(
        _mlp_kernel,
        out_shape=jax.ShapeDtypeStruct((B_p, out_p), jnp.float32),
        grid=grid,
        in_specs=[
            pl.BlockSpec((tile_b, in_p), lambda i: (i, 0)),   # x: streamed over batch
            resident((in_p, hid_p)),                          # w1: resident
            resident((1, hid_p)),                             # b1: resident
            resident((hid_p, out_p)),                         # w2: resident
            resident((1, out_p)),                             # b2: resident
        ],
        out_specs=pl.BlockSpec((tile_b, out_p), lambda i: (i, 0)),
        compiler_params=pltpu.CompilerParams(
            dimension_semantics=("parallel",)),
        cost_estimate=cost,
    )(x_p, w1_p, b1_p, w2_p, b2_p)

    return out_padded[:B, :out_size]


def _init_linear_params(key, in_features, out_features, dtype=jnp.float32):
    # Mirrors nn.Linear default init: U(-1/sqrt(in), 1/sqrt(in)) for W and b.
    kw, kb = jax.random.split(key)
    bound = 1.0 / jnp.sqrt(jnp.array(in_features, dtype=jnp.float32))
    # Stored as (in, out) — i.e. transpose of PyTorch's (out, in) weight.
    w = jax.random.uniform(kw, (in_features, out_features), dtype=dtype,
                           minval=-bound, maxval=bound)
    b = jax.random.uniform(kb, (1, out_features), dtype=dtype,
                           minval=-bound, maxval=bound)
    return w, b


if __name__ == "__main__":
    input_size, hidden_size, output_size = 32, 64, 16
    batch = 8

    key = jax.random.PRNGKey(0)
    kx, k1, k2 = jax.random.split(key, 3)

    x = jax.random.normal(kx, (batch, input_size), dtype=jnp.float32)
    w1, b1 = _init_linear_params(k1, input_size, hidden_size)
    w2, b2 = _init_linear_params(k2, hidden_size, output_size)

    out = biased_model_forward(x, w1, b1, w2, b2)
    jax.block_until_ready(out)
    assert out.shape == (batch, output_size)

    # Pure-JAX f32 reference (PyTorch semantics). Tolerance accounts for the
    # bf16 matmul operands and the approx-reciprocal sigmoid.
    ref = (1.0 / (1.0 + jnp.exp(-(x @ w1 + b1)))) @ w2 + b2
    assert jnp.allclose(out, ref, atol=5e-2, rtol=5e-2), (
        float(jnp.max(jnp.abs(out - ref))))

    print("KERNEL_OK")
</pallas_src>

<mosaic_0001>
module attributes {stable_mosaic.version = 11 : i64} {
  func.func @_mlp_kernel(%arg0: i32, %arg1: memref<8x128xbf16, #tpu.memory_space<vmem>>, %arg2: memref<128x128xbf16, #tpu.memory_space<vmem>>, %arg3: memref<1x128xf32, #tpu.memory_space<vmem>>, %arg4: memref<128x128xbf16, #tpu.memory_space<vmem>>, %arg5: memref<1x128xf32, #tpu.memory_space<vmem>>, %arg6: memref<8x128xf32, #tpu.memory_space<vmem>>) attributes {dimension_semantics = [#tpu.dimension_semantics<parallel>], iteration_bounds = array<i64: 1>, scalar_prefetch = 0 : i64, scratch_operands = 0 : i64, tpu.core_type = #tpu.core_type<tc>, window_params = [{transform_indices = @transform_0, window_bounds = array<i64: 8, 128>}, {pipeline_mode = #tpu.pipeline_mode<synchronous>, transform_indices = @transform_1, window_bounds = array<i64: 128, 128>}, {pipeline_mode = #tpu.pipeline_mode<synchronous>, transform_indices = @transform_2, window_bounds = array<i64: 1, 128>}, {pipeline_mode = #tpu.pipeline_mode<synchronous>, transform_indices = @transform_3, window_bounds = array<i64: 128, 128>}, {pipeline_mode = #tpu.pipeline_mode<synchronous>, transform_indices = @transform_4, window_bounds = array<i64: 1, 128>}, {transform_indices = @transform_5, window_bounds = array<i64: 8, 128>}]} {
    %c0 = arith.constant 0 : index
    %c0_0 = arith.constant 0 : index
    %0 = vector.load %arg1[%c0, %c0_0] : memref<8x128xbf16, #tpu.memory_space<vmem>>, vector<8x128xbf16>
    %c0_1 = arith.constant 0 : index
    %c0_2 = arith.constant 0 : index
    %1 = vector.load %arg2[%c0_1, %c0_2] : memref<128x128xbf16, #tpu.memory_space<vmem>>, vector<128x128xbf16>
    %cst = arith.constant dense<0.000000e+00> : vector<8x128xf32>
    %2 = tpu.matmul %0, %1, %cst {dimension_numbers = #tpu.dot_dimension_numbers<[1], [0], [0], [1], [0, 0, 1, 1], [], []>} : vector<8x128xbf16>, vector<128x128xbf16>, vector<8x128xf32> -> vector<8x128xf32>
    %c0_3 = arith.constant 0 : index
    %c0_4 = arith.constant 0 : index
    %3 = vector.load %arg3[%c0_3, %c0_4] : memref<1x128xf32, #tpu.memory_space<vmem>>, vector<1x128xf32>
    %4 = vector.broadcast %3 : vector<1x128xf32> to vector<8x128xf32>
    %5 = arith.addf %2, %4 : vector<8x128xf32>
    %cst_5 = arith.constant 0.000000e+00 : f32
    %6 = vector.broadcast %cst_5 : f32 to vector<8x128xf32>
    %7 = arith.subf %6, %5 : vector<8x128xf32>
    %8 = math.exp %7 : vector<8x128xf32>
    %cst_6 = arith.constant 1.000000e+00 : f32
    %9 = vector.broadcast %cst_6 : f32 to vector<8x128xf32>
    %10 = arith.addf %9, %8 : vector<8x128xf32>
    %11 = tpu.reciprocal %10 {approx = true} : vector<8x128xf32> -> vector<8x128xf32>
    %12 = arith.truncf %11 : vector<8x128xf32> to vector<8x128xbf16>
    %c0_7 = arith.constant 0 : index
    %c0_8 = arith.constant 0 : index
    %13 = vector.load %arg4[%c0_7, %c0_8] : memref<128x128xbf16, #tpu.memory_space<vmem>>, vector<128x128xbf16>
    %cst_9 = arith.constant dense<0.000000e+00> : vector<8x128xf32>
    %14 = tpu.matmul %12, %13, %cst_9 {dimension_numbers = #tpu.dot_dimension_numbers<[1], [0], [0], [1], [0, 0, 1, 1], [], []>} : vector<8x128xbf16>, vector<128x128xbf16>, vector<8x128xf32> -> vector<8x128xf32>
    %c0_10 = arith.constant 0 : index
    %c0_11 = arith.constant 0 : index
    %15 = vector.load %arg5[%c0_10, %c0_11] : memref<1x128xf32, #tpu.memory_space<vmem>>, vector<1x128xf32>
    %16 = vector.broadcast %15 : vector<1x128xf32> to vector<8x128xf32>
    %17 = arith.addf %14, %16 : vector<8x128xf32>
    %c0_12 = arith.constant 0 : index
    %c0_13 = arith.constant 0 : index
    %18 = vector.load %arg6[%c0_12, %c0_13] : memref<8x128xf32, #tpu.memory_space<vmem>>, vector<8x128xf32>
    tpu.vector_store %arg6[%c0_12, %c0_13], %17 {strides = array<i32>} : memref<8x128xf32, #tpu.memory_space<vmem>>, vector<8x128xf32>,
    return
  }
  func.func @transform_0(%arg0: i32) -> (i32, i32) {
    %c0_i32 = arith.constant 0 : i32
    %c0_i32_0 = arith.constant 0 : i32
    return %arg0, %c0_i32 : i32, i32
  }
  func.func @transform_1(%arg0: i32) -> (i32, i32) {
    %c0_i32 = arith.constant 0 : i32
    %c0_i32_0 = arith.constant 0 : i32
    %c0_i32_1 = arith.constant 0 : i32
    return %c0_i32, %c0_i32_0 : i32, i32
  }
  func.func @transform_2(%arg0: i32) -> (i32, i32) {
    %c0_i32 = arith.constant 0 : i32
    %c0_i32_0 = arith.constant 0 : i32
    %c0_i32_1 = arith.constant 0 : i32
    return %c0_i32, %c0_i32_0 : i32, i32
  }
  func.func @transform_3(%arg0: i32) -> (i32, i32) {
    %c0_i32 = arith.constant 0 : i32
    %c0_i32_0 = arith.constant 0 : i32
    %c0_i32_1 = arith.constant 0 : i32
    return %c0_i32, %c0_i32_0 : i32, i32
  }
  func.func @transform_4(%arg0: i32) -> (i32, i32) {
    %c0_i32 = arith.constant 0 : i32
    %c0_i32_0 = arith.constant 0 : i32
    %c0_i32_1 = arith.constant 0 : i32
    return %c0_i32, %c0_i32_0 : i32, i32
  }
  func.func @transform_5(%arg0: i32) -> (i32, i32) {
    %c0_i32 = arith.constant 0 : i32
    %c0_i32_0 = arith.constant 0 : i32
    return %arg0, %c0_i32 : i32, i32
  }
}

</mosaic_0001>

<llo_original>
// kernel: tpu_custom_call.1
$region0: #{tpu_custom_call.1}
  #allocation0 [shape = 'u32[]', space=smem, size = 0x4, offset = 0x4, fixed_abs, tag = 'smem constant byte address 0x4 - core index']
  #allocation1 [shape = 'u32[72,128]{1,0:T(1,128)}', space=vmem, size = 0x9000, scoped, tag = 'internal scratch']
  %s0 = inlined_call_operand.hbm [shape: bf16[8,128], index: 0, kind: input, shape index: {}]
  %s1 = inlined_call_operand.hbm [shape: bf16[128,128], index: 1, kind: input, shape index: {}]
  %s2 = inlined_call_operand.vmem [shape: f32[1,128], index: 2, kind: input, shape index: {}]
  %s3 = inlined_call_operand.hbm [shape: bf16[128,128], index: 3, kind: input, shape index: {}]
  %s4 = inlined_call_operand.vmem [shape: f32[1,128], index: 4, kind: input, shape index: {}]
  %s5 = inlined_call_operand.hbm [shape: f32[8,128], index: 5, kind: output, shape index: {}]
  %s6 = sld [smem:[#allocation0]]
  $region42: #{tpu_custom_call.1} parent=0
    _
  %s8 = ssub.s32 1, %s6
  %s9 = scalar_select 0, %s8, %s6
  $region1: #{tpu_custom_call.1} parent=0
    #allocation2 [shape = 'u8[2048]{0}', space=vmem, size = 0x800, scoped, tag = 'input window, operand 0, single buffered']
    #allocation3 [shape = 's32[1]{0}', space=sflag, size = 0x4, scoped, tag = 'scoped memory for tpu_custom_call.1']
    #allocation4 [shape = 's32[1]{0}', space=sflag, size = 0x4, scoped, tag = 'scoped memory for tpu_custom_call.1']
    #allocation5 [shape = 'u8[32768]{0}', space=vmem, size = 0x8000, scoped, tag = 'input window, operand 1, single buffered']
    #allocation6 [shape = 's32[1]{0}', space=sflag, size = 0x4, scoped, tag = 'scoped memory for tpu_custom_call.1']
    #allocation7 [shape = 'u8[32768]{0}', space=vmem, size = 0x8000, scoped, tag = 'input window, operand 3, single buffered']
    #allocation8 [shape = 'u8[4096]{0}', space=vmem, size = 0x1000, scoped, tag = 'output window, operand 0, single buffered']
    %10 = vsyncpa [#allocation3], 0
    %11 = vsyncpa [#allocation6], 0
    %12 = vsyncpa [#allocation4], 0
    // Predicated region
    $region2: #{tpu_custom_call.1} parent=1 // pred_check
      _
    $region3: #{tpu_custom_call.1} parent=1 // pred_check_branch
      %14 = sbr.rel (0) target = $region5
    $region4: #{tpu_custom_call.1} parent=1 // pred_region
      %16 = vsyncadd [#allocation3], 0
      %s18 = sshll.u32 %s0, 4
      %s19 = int_to_ptr.hbm [resolvable:$true] %s18
      %s20 = sshll.u32 [#allocation2], 4
      %s21 = int_to_ptr.vmem [resolvable:$true] %s20
      %23 = dma.hbm_to_vmem [thread:$0]  %s19, 64, %s21, [#allocation3]
    $region5: #{tpu_custom_call.1} parent=1 // pred_fallthru
      _
    // Predicated region
    $region6: #{tpu_custom_call.1} parent=1 // pred_check
      _
    $region7: #{tpu_custom_call.1} parent=1 // pred_check_branch
      %25 = sbr.rel (0) target = $region9
    $region8: #{tpu_custom_call.1} parent=1 // pred_region
      %27 = vsyncadd [#allocation6], 0
      %s28 = sshll.u32 %s1, 4
      %s29 = int_to_ptr.hbm [resolvable:$true] %s28
      %s30 = sshll.u32 [#allocation5], 4
      %s31 = int_to_ptr.vmem [resolvable:$true] %s30
      %36 = dma.hbm_to_vmem [thread:$0]  %s29, 1024, %s31, [#allocation6], 64, 64, 4
    $region9: #{tpu_custom_call.1} parent=1 // pred_fallthru
      _
    // Predicated region
    $region10: #{tpu_custom_call.1} parent=1 // pred_check
      _
    $region11: #{tpu_custom_call.1} parent=1 // pred_check_branch
      %38 = sbr.rel (0) target = $region13
    $region12: #{tpu_custom_call.1} parent=1 // pred_region
      _
    $region13: #{tpu_custom_call.1} parent=1 // pred_fallthru
      _
    // Predicated region
    $region14: #{tpu_custom_call.1} parent=1 // pred_check
      _
    $region15: #{tpu_custom_call.1} parent=1 // pred_check_branch
      %40 = sbr.rel (0) target = $region17
    $region16: #{tpu_custom_call.1} parent=1 // pred_region
      %42 = vsyncadd [#allocation6], 0
      %s43 = sshll.u32 %s3, 4
      %s44 = int_to_ptr.hbm [resolvable:$true] %s43
      %s45 = sshll.u32 [#allocation7], 4
      %s46 = int_to_ptr.vmem [resolvable:$true] %s45
      %51 = dma.hbm_to_vmem [thread:$0]  %s44, 1024, %s46, [#allocation6], 64, 64, 4
    $region17: #{tpu_custom_call.1} parent=1 // pred_fallthru
      _
    // Predicated region
    $region18: #{tpu_custom_call.1} parent=1 // pred_check
      _
    $region19: #{tpu_custom_call.1} parent=1 // pred_check_branch
      %53 = sbr.rel (0) target = $region21
    $region20: #{tpu_custom_call.1} parent=1 // pred_region
      _
    $region21: #{tpu_custom_call.1} parent=1 // pred_fallthru
      _
    // Predicated region
    $region22: #{tpu_custom_call.1} parent=1 // pred_check
      _
    $region23: #{tpu_custom_call.1} parent=1 // pred_check_branch
      %55 = sbr.rel (0) target = $region25
    $region24: #{tpu_custom_call.1} parent=1 // pred_region
      %57 = dma.done [#allocation3], 64
    $region25: #{tpu_custom_call.1} parent=1 // pred_fallthru
      _
    // Predicated region
    $region26: #{tpu_custom_call.1} parent=1 // pred_check
      _
    $region27: #{tpu_custom_call.1} parent=1 // pred_check_branch
      %59 = sbr.rel (0) target = $region29
    $region28: #{tpu_custom_call.1} parent=1 // pred_region
      %61 = dma.done [#allocation6], 1024
    $region29: #{tpu_custom_call.1} parent=1 // pred_fallthru
      _
    // Predicated region
    $region30: #{tpu_custom_call.1} parent=1 // pred_check
      _
    $region31: #{tpu_custom_call.1} parent=1 // pred_check_branch
      %63 = sbr.rel (0) target = $region33
    $region32: #{tpu_custom_call.1} parent=1 // pred_region
      %65 = dma.done [#allocation6], 1024
    $region33: #{tpu_custom_call.1} parent=1 // pred_fallthru
      _
    %v66 = vld [vmem:[#allocation2] sm:$0xf]
    %v67 = vld [vmem:[#allocation5] sm:$0xf]
    %v68 = vld [vmem:[#allocation5 + $0x4] sm:$0xf]
    %v69 = vld [vmem:[#allocation5 + $0x8] sm:$0xf]
    %v70 = vld [vmem:[#allocation5 + $0xc] sm:$0xf]
    %v71 = vld [vmem:[#allocation5 + $0x10] sm:$0xf]
    %v72 = vld [vmem:[#allocation5 + $0x14] sm:$0xf]
    %v73 = vld [vmem:[#allocation5 + $0x18] sm:$0xf]
    %v74 = vld [vmem:[#allocation5 + $0x1c] sm:$0xf]
    %v75 = vld [vmem:[#allocation5 + $0x20] sm:$0xf]
    %v76 = vld [vmem:[#allocation5 + $0x24] sm:$0xf]
    %v77 = vld [vmem:[#allocation5 + $0x28] sm:$0xf]
    %v78 = vld [vmem:[#allocation5 + $0x2c] sm:$0xf]
    %v79 = vld [vmem:[#allocation5 + $0x30] sm:$0xf]
    %v80 = vld [vmem:[#allocation5 + $0x34] sm:$0xf]
    %v81 = vld [vmem:[#allocation5 + $0x38] sm:$0xf]
    %v82 = vld [vmem:[#allocation5 + $0x3c] sm:$0xf]
    %v83 = vld [vmem:[%s2] sm:$0x1]
    %v85 = vperm.slane %v83, 0
    %v103 = vunpack.c.l.b16 %v67
    %v104 = vunpack.c.l.b16 %v68
    %v105 = vunpack.c.l.b16 %v69
    %v106 = vunpack.c.l.b16 %v70
    %v107 = vunpack.c.l.b16 %v71
    %v108 = vunpack.c.l.b16 %v72
    %v109 = vunpack.c.l.b16 %v73
    %v110 = vunpack.c.l.b16 %v74
    %v111 = vunpack.c.l.b16 %v75
    %v112 = vunpack.c.l.b16 %v76
    %v113 = vunpack.c.l.b16 %v77
    %v114 = vunpack.c.l.b16 %v78
    %v115 = vunpack.c.l.b16 %v79
    %v116 = vunpack.c.l.b16 %v80
    %v117 = vunpack.c.l.b16 %v81
    %v118 = vunpack.c.l.b16 %v82
    %v119 = vpack.c.b16 %v104, %v103
    %v120 = vpack.c.b16 %v106, %v105
    %v121 = vpack.c.b16 %v108, %v107
    %v122 = vpack.c.b16 %v110, %v109
    %v123 = vpack.c.b16 %v112, %v111
    %v124 = vpack.c.b16 %v114, %v113
    %v125 = vpack.c.b16 %v116, %v115
    %v126 = vpack.c.b16 %v118, %v117
    %135 = vmatpush.bf16.msra.mxu0 %v126
    %136 = vmatpush.bf16.msra.mxu0 %v125
    %137 = vmatpush.bf16.msra.mxu0 %v124
    %138 = vmatpush.bf16.msra.mxu0 %v123
    %139 = vmatpush.bf16.msra.mxu0 %v122
    %140 = vmatpush.bf16.msra.mxu0 %v121
    %141 = vmatpush.bf16.msra.mxu0 %v120
    %142 = vmatpush.bf16.msra.mxu0 %v119
    %143 = vmatmul.bf16.gmra.mxu0 %v66
    %v144 = vpop.f32.mrf.mxu0
    %v145 = vadd.f32 %v85, %v144
    %v146 = vpop.f32.mrf.mxu0
    %147 = vdwg.mxu0
    %v148 = vsub.f32 0.0, %v145
    %v149 = vmul.f32 %v148, 1.442695
    %v150 = vpow.pop %v149
    %v151 = vadd.f32 %v150, 1.0
    %v152 = vrcp.pop %v151
    %v153 = vpack.c.bf16 %v152, %v152
    %v154 = vld [vmem:[#allocation7] sm:$0xf]
    %v155 = vld [vmem:[#allocation7 + $0x4] sm:$0xf]
    %v156 = vld [vmem:[#allocation7 + $0x8] sm:$0xf]
    %v157 = vld [vmem:[#allocation7 + $0xc] sm:$0xf]
    %v158 = vld [vmem:[#allocation7 + $0x10] sm:$0xf]
    %v159 = vld [vmem:[#allocation7 + $0x14] sm:$0xf]
    %v160 = vld [vmem:[#allocation7 + $0x18] sm:$0xf]
    %v161 = vld [vmem:[#allocation7 + $0x1c] sm:$0xf]
    %v162 = vld [vmem:[#allocation7 + $0x20] sm:$0xf]
    %v163 = vld [vmem:[#allocation7 + $0x24] sm:$0xf]
    %v164 = vld [vmem:[#allocation7 + $0x28] sm:$0xf]
    %v165 = vld [vmem:[#allocation7 + $0x2c] sm:$0xf]
    %v166 = vld [vmem:[#allocation7 + $0x30] sm:$0xf]
    %v167 = vld [vmem:[#allocation7 + $0x34] sm:$0xf]
    %v168 = vld [vmem:[#allocation7 + $0x38] sm:$0xf]
    %v169 = vld [vmem:[#allocation7 + $0x3c] sm:$0xf]
    %v170 = vld [vmem:[%s4] sm:$0x1]
    %v172 = vperm.slane %v170, 0
    %v190 = vunpack.c.l.b16 %v154
    %v191 = vunpack.c.l.b16 %v155
    %v192 = vunpack.c.l.b16 %v156
    %v193 = vunpack.c.l.b16 %v157
    %v194 = vunpack.c.l.b16 %v158
    %v195 = vunpack.c.l.b16 %v159
    %v196 = vunpack.c.l.b16 %v160
    %v197 = vunpack.c.l.b16 %v161
    %v198 = vunpack.c.l.b16 %v162
    %v199 = vunpack.c.l.b16 %v163
    %v200 = vunpack.c.l.b16 %v164
    %v201 = vunpack.c.l.b16 %v165
    %v202 = vunpack.c.l.b16 %v166
    %v203 = vunpack.c.l.b16 %v167
    %v204 = vunpack.c.l.b16 %v168
    %v205 = vunpack.c.l.b16 %v169
    %v206 = vpack.c.b16 %v191, %v190
    %v207 = vpack.c.b16 %v193, %v192
    %v208 = vpack.c.b16 %v195, %v194
    %v209 = vpack.c.b16 %v197, %v196
    %v210 = vpack.c.b16 %v199, %v198
    %v211 = vpack.c.b16 %v201, %v200
    %v212 = vpack.c.b16 %v203, %v202
    %v213 = vpack.c.b16 %v205, %v204
    %222 = vmatpush.bf16.msra.mxu0 %v213
    %223 = vmatpush.bf16.msra.mxu0 %v212
    %224 = vmatpush.bf16.msra.mxu0 %v211
    %225 = vmatpush.bf16.msra.mxu0 %v210
    %226 = vmatpush.bf16.msra.mxu0 %v209
    %227 = vmatpush.bf16.msra.mxu0 %v208
    %228 = vmatpush.bf16.msra.mxu0 %v207
    %229 = vmatpush.bf16.msra.mxu0 %v206
    %230 = vmatmul.bf16.gmra.mxu0 %v153
    %v231 = vpop.f32.mrf.mxu0
    %v232 = vadd.f32 %v172, %v231
    %v233 = vpop.f32.mrf.mxu0
    %234 = vdwg.mxu0
    %235 = vst [vmem:[#allocation8] sm:$0xff] %v232
    // Predicated region
    $region34: #{tpu_custom_call.1} parent=1 // pred_check
      _
    $region35: #{tpu_custom_call.1} parent=1 // pred_check_branch
      %237 = sbr.rel (0) target = $region37
    $region36: #{tpu_custom_call.1} parent=1 // pred_region
      %239 = vsyncadd [#allocation4], 0
      %s241 = sshll.u32 [#allocation8], 4
      %s242 = int_to_ptr.vmem [resolvable:$true] %s241
      %s243 = sshll.u32 %s5, 4
      %s244 = int_to_ptr.hbm [resolvable:$true] %s243
      %246 = dma.vmem_to_hbm [thread:$0]  %s242, 128, %s244, [#allocation4]
    $region37: #{tpu_custom_call.1} parent=1 // pred_fallthru
      _
    // Predicated region
    $region38: #{tpu_custom_call.1} parent=1 // pred_check
      _
    $region39: #{tpu_custom_call.1} parent=1 // pred_check_branch
      %248 = sbr.rel (0) target = $region41
    $region40: #{tpu_custom_call.1} parent=1 // pred_region
      %250 = dma.done [#allocation4], 128
    $region41: #{tpu_custom_call.1} parent=1 // pred_fallthru
      _
    %251 = vsyncpa [#allocation3], 1
    %252 = vsyncpa [#allocation6], 1
    %253 = vsyncpa [#allocation4], 1

</llo_original>
